<compile_context>
chip_gen: v7x
topology: tpu7x:2x2x1
jax: 0.10.0
libtpu: 0.0.40
codegen_flags: <defaults>
</compile_context>

<pallas_src>
import functools

import jax
import jax.numpy as jnp
from jax.experimental import pallas as pl
from jax.experimental.pallas import tpu as pltpu


def f1_kernel(fn_ref, fp_ref, out_ref, *, p1):
    # fn_ref / fp_ref: (1, 1) f32 in VMEM (the raw nn.Parameters).
    # One EUP sigmoid per operand; all remaining ops are a handful of VALU
    # scalars on an otherwise idle vreg -- effectively free.
    s_fn = jax.nn.sigmoid(fn_ref[...])          # sigmoid(fn)
    s_fp = jax.nn.sigmoid(fp_ref[...])          # sigmoid(fp)
    fn_term = p1 * s_fn                         # p1 * sigmoid(fn)
    fp_term = (1.0 - p1) * s_fp                 # (1 - p1) * sigmoid(fp)
    num = 2.0 * (p1 - fn_term)
    den = (2.0 * p1) - fn_term + fp_term
    # Exact divide (approx EUP reciprocal would miss the 1e-6 tolerance).
    out_ref[...] = num / den


def _f1_forward_impl(p1, fn_param, fp_param):
    # (1,) -> (1, 1): pure layout bitcast, no extra HBM traffic / dispatch
    # once jit-ted together with the pallas_call.
    fn2d = fn_param.astype(jnp.float32).reshape(1, 1)
    fp2d = fp_param.astype(jnp.float32).reshape(1, 1)

    out = pl.pallas_call(
        functools.partial(f1_kernel, p1=p1),
        out_shape=jax.ShapeDtypeStruct((1, 1), jnp.float32),
        grid=(),
        in_specs=[
            pl.BlockSpec((1, 1), lambda: (0, 0), memory_space=pltpu.VMEM),
            pl.BlockSpec((1, 1), lambda: (0, 0), memory_space=pltpu.VMEM),
        ],
        out_specs=pl.BlockSpec((1, 1), lambda: (0, 0), memory_space=pltpu.VMEM),
        cost_estimate=pl.CostEstimate(
            flops=10, transcendentals=2, bytes_accessed=12),
    )(fn2d, fp2d)
    return out.reshape(1)


# p1 is a compile-time constant baked into the kernel -> static arg.
f1_forward = jax.jit(_f1_forward_impl, static_argnums=0)


if __name__ == "__main__":
    # Deterministic setup matching F1.__init__: fn = fp = zeros(1).
    key = jax.random.PRNGKey(0)  # params are zeros per __init__; key kept for reproducibility
    p1 = 0.0163
    fn_param = jnp.zeros((1,), dtype=jnp.float32)
    fp_param = jnp.zeros((1,), dtype=jnp.float32)

    out = jax.block_until_ready(f1_forward(p1, fn_param, fp_param))

    # Pure-JAX reference of the forward semantics.
    fn_ref = p1 * jax.nn.sigmoid(fn_param)
    fp_ref = (1.0 - p1) * jax.nn.sigmoid(fp_param)
    ref = 2.0 * (p1 - fn_ref) / (2.0 * p1 - fn_ref + fp_ref)
    assert jnp.allclose(out, ref, rtol=1e-6, atol=1e-6), (out, ref)

    print("KERNEL_OK")
</pallas_src>

<mosaic_0001>
module attributes {stable_mosaic.version = 11 : i64} {
  func.func @f1_kernel(%arg0: memref<1x1xf32, #tpu.memory_space<vmem>>, %arg1: memref<1x1xf32, #tpu.memory_space<vmem>>, %arg2: memref<1x1xf32, #tpu.memory_space<vmem>>) attributes {dimension_semantics = [], scalar_prefetch = 0 : i64, scratch_operands = 0 : i64, tpu.core_type = #tpu.core_type<tc>} {
    %c0 = arith.constant 0 : index
    %c0_0 = arith.constant 0 : index
    %0 = vector.load %arg0[%c0, %c0_0] : memref<1x1xf32, #tpu.memory_space<vmem>>, vector<1x1xf32>
    %1 = arith.negf %0 : vector<1x1xf32>
    %2 = math.exp %1 : vector<1x1xf32>
    %cst = arith.constant 1.000000e+00 : f32
    %3 = vector.broadcast %cst : f32 to vector<1x1xf32>
    %4 = arith.addf %3, %2 : vector<1x1xf32>
    %5 = arith.divf %3, %4 : vector<1x1xf32>
    %c0_1 = arith.constant 0 : index
    %c0_2 = arith.constant 0 : index
    %6 = vector.load %arg1[%c0_1, %c0_2] : memref<1x1xf32, #tpu.memory_space<vmem>>, vector<1x1xf32>
    %7 = arith.negf %6 : vector<1x1xf32>
    %8 = math.exp %7 : vector<1x1xf32>
    %cst_3 = arith.constant 1.000000e+00 : f32
    %9 = vector.broadcast %cst_3 : f32 to vector<1x1xf32>
    %10 = arith.addf %9, %8 : vector<1x1xf32>
    %11 = arith.divf %9, %10 : vector<1x1xf32>
    %cst_4 = arith.constant 1.630000e-02 : f32
    %12 = vector.broadcast %cst_4 : f32 to vector<1x1xf32>
    %13 = arith.mulf %12, %5 : vector<1x1xf32>
    %cst_5 = arith.constant 0.983699977 : f32
    %14 = vector.broadcast %cst_5 : f32 to vector<1x1xf32>
    %15 = arith.mulf %14, %11 : vector<1x1xf32>
    %cst_6 = arith.constant 1.630000e-02 : f32
    %16 = vector.broadcast %cst_6 : f32 to vector<1x1xf32>
    %17 = arith.subf %16, %13 : vector<1x1xf32>
    %cst_7 = arith.constant 2.000000e+00 : f32
    %18 = vector.broadcast %cst_7 : f32 to vector<1x1xf32>
    %19 = arith.mulf %18, %17 : vector<1x1xf32>
    %cst_8 = arith.constant 3.260000e-02 : f32
    %20 = vector.broadcast %cst_8 : f32 to vector<1x1xf32>
    %21 = arith.subf %20, %13 : vector<1x1xf32>
    %22 = arith.addf %21, %15 : vector<1x1xf32>
    %23 = arith.divf %19, %22 : vector<1x1xf32>
    %c0_9 = arith.constant 0 : index
    %c0_10 = arith.constant 0 : index
    %24 = vector.load %arg2[%c0_9, %c0_10] : memref<1x1xf32, #tpu.memory_space<vmem>>, vector<1x1xf32>
    tpu.vector_store %arg2[%c0_9, %c0_10], %23 {strides = array<i32>} : memref<1x1xf32, #tpu.memory_space<vmem>>, vector<1x1xf32>,
    return
  }
}

</mosaic_0001>

<llo_original>
// kernel: _f1_forward_impl.1
$region0: #{_f1_forward_impl.1}
  #allocation0 [shape = 'u32[]', space=smem, size = 0x4, offset = 0x4, fixed_abs, tag = 'smem constant byte address 0x4 - core index']
  #allocation1 [shape = 'u32[144,128]{1,0:T(1,128)}', space=vmem, size = 0x12000, scoped, tag = 'internal scratch']
  #allocation2 [shape = 'f32[1,1]{1,0:T(1,128)S(1)}', space=vmem, size = 0x200, scoped, tag = 'scoped memory for _f1_forward_impl.1']
  #allocation3 [shape = 'f32[1,1]{1,0:T(1,128)S(1)}', space=vmem, size = 0x200, scoped, tag = 'scoped memory for _f1_forward_impl.1']
  %s0 = inlined_call_operand.<no memory space> [shape: f32[1,1], index: 0, kind: input, shape index: {}]
  %s1 = inlined_call_operand.<no memory space> [shape: f32[1,1], index: 1, kind: input, shape index: {}]
  %s2 = inlined_call_operand.hbm [shape: f32[1,1], index: 2, kind: output, shape index: {}]
  %s3 = sld [smem:[#allocation0]]
  $region18: #{_f1_forward_impl.1} parent=0
    _
  %s5 = ssub.s32 1, %s3
  %s6 = scalar_select 0, %s5, %s3
  %v7 = vstv %s0
  %8 = vst [vmem:[#allocation2] sm:$0x1] %v7
  %v9 = vstv %s1
  %10 = vst [vmem:[#allocation3] sm:$0x1] %v9
  $region1: #{_f1_forward_impl.1} parent=0
    #allocation4 [shape = 'u8[512]{0}', space=vmem, size = 0x400, scoped, tag = 'output window, operand 0, single buffered']
    #allocation5 [shape = 's32[1]{0}', space=sflag, size = 0x4, scoped, tag = 'scoped memory for _f1_forward_impl.1']
    %11 = vsyncpa [#allocation5], 0
    // Predicated region
    $region2: #{_f1_forward_impl.1} parent=1 // pred_check
      _
    $region3: #{_f1_forward_impl.1} parent=1 // pred_check_branch
      %13 = sbr.rel (0) target = $region5
    $region4: #{_f1_forward_impl.1} parent=1 // pred_region
      _
    $region5: #{_f1_forward_impl.1} parent=1 // pred_fallthru
      _
    // Predicated region
    $region6: #{_f1_forward_impl.1} parent=1 // pred_check
      _
    $region7: #{_f1_forward_impl.1} parent=1 // pred_check_branch
      %15 = sbr.rel (0) target = $region9
    $region8: #{_f1_forward_impl.1} parent=1 // pred_region
      _
    $region9: #{_f1_forward_impl.1} parent=1 // pred_fallthru
      _
    %v16 = vld [vmem:[#allocation2] sm:$0x1]
    %v17 = vxor.u32 %v16, 2147483648
    %v18 = vmul.f32 %v17, 1.442695
    %v19 = vpow.pop %v18
    %v20 = vadd.f32 %v19, 1.0
    %v21 = vrcp.pop %v20
    %v22 = vmul.f32 1.0, %v21
    %v23 = vld [vmem:[#allocation3] sm:$0x1]
    %v24 = vxor.u32 %v23, 2147483648
    %v25 = vmul.f32 %v24, 1.442695
    %v26 = vpow.pop %v25
    %v27 = vadd.f32 %v26, 1.0
    %v28 = vrcp.pop %v27
    %v29 = vmul.f32 1.0, %v28
    %v30 = vmul.f32 %v22, 0.0163
    %v31 = vmul.f32 %v29, 0.9837
    %v32 = vsub.f32 0.0163, %v30
    %v33 = vmul.f32 %v32, 2.0
    %v34 = vsub.f32 0.0326, %v30
    %v35 = vadd.f32 %v34, %v31
    %v36 = vrcp.pop %v35
    %v37 = vmul.f32 %v33, %v36
    %vm38 = vcmask 0
    %39 = vst.msk [vmem:[#allocation4] sm:$0x1] %vm38, %v37
    // Predicated region
    $region10: #{_f1_forward_impl.1} parent=1 // pred_check
      _
    $region11: #{_f1_forward_impl.1} parent=1 // pred_check_branch
      %41 = sbr.rel (0) target = $region13
    $region12: #{_f1_forward_impl.1} parent=1 // pred_region
      %s43 = ssub.s32 16, 16
      %44 = vsyncadd [#allocation5], %s43
      %s46 = sshll.u32 [#allocation4], 4
      %s47 = int_to_ptr.vmem [resolvable:$true] %s46
      %49 = dma.vmem_to_hbm [thread:$0]  %s47, 16, %s2, [#allocation5]
    $region13: #{_f1_forward_impl.1} parent=1 // pred_fallthru
      _
    // Predicated region
    $region14: #{_f1_forward_impl.1} parent=1 // pred_check
      _
    $region15: #{_f1_forward_impl.1} parent=1 // pred_check_branch
      %51 = sbr.rel (0) target = $region17
    $region16: #{_f1_forward_impl.1} parent=1 // pred_region
      %52 = dma.done [#allocation5], 16
    $region17: #{_f1_forward_impl.1} parent=1 // pred_fallthru
      _
    %53 = vsyncpa [#allocation5], 1

</llo_original>
